<compile_context>
chip_gen: v5e
topology: v5e:2x2
jax: 0.10.0
libtpu: 0.0.40
codegen_flags: <defaults>
</compile_context>

<pallas_src>
import jax
import jax.numpy as jnp
from jax import lax
from jax.experimental import pallas as pl
from jax.experimental.pallas import tpu as pltpu

# ---------------- sizes (small, consistent with the module) ----------------
B = 2          # batch
CIN = 4        # incidence-matrix input channels
H = W = 16     # spatial extent of the incidence "image"
COUT = 8       # energy-kernel output channels
FEAT = 8       # hand-crafted feature dim (un_f / c_f)
ZDIM = FEAT + COUT
HID = 32       # FC hidden width
KH = KW = 3    # conv kernel size
HW = H * W
NTOT = 2 * B                 # un + c samples handled in one fused pass
KTAP = KH * KW * CIN         # 36 = flattened conv-tap contraction dim
NHEAD = 2 * HID              # merged reg+cls hidden width

# Parameter-slab row offsets (8-row-aligned blocks, 128 lanes wide).
R_CONV = 0      # rows 0..7   : conv_w^T (COUT, KTAP), conv_b col at lane KTAP
R_W1 = 8        # rows 8..71  : w1^T (NHEAD, ZDIM), b1 col at lane ZDIM
R_W2 = 72       # rows 72..73 : block-diag w2^T (2, NHEAD), b2 col at lane NHEAD
PSLAB_ROWS = 80
PSLAB_LANES = 128


# ------------------------- fused forward kernel ----------------------------
def _cnfnet_kernel(taps_ref, ps_ref, f_ref, o_ref):
    # IncidenceConvolution for both un_inc and c_inc at once:
    # 3x3 SAME conv as one lane-dense MXU matmul,
    # (COUT, KTAP) @ (KTAP, NTOT*HW) -> (8, 1024) = 8 dense f32 vregs.
    cw_t = ps_ref[R_CONV:R_CONV + COUT, 0:KTAP]               # (8, 36)
    cb_t = ps_ref[R_CONV:R_CONV + COUT, KTAP:KTAP + 1]        # (8, 1)
    conv = jnp.dot(cw_t, taps_ref[...],
                   preferred_element_type=jnp.float32)        # (COUT, NTOT*HW)
    conv = jnp.maximum(conv + cb_t, 0.0)                      # bias + ReLU (VPU)

    # Global average pool: per-sample 256-lane segment reductions (XLU slot),
    # no pooling matmul, no iota/where mask.
    y_t = jnp.concatenate(
        [jnp.sum(conv[:, n * HW:(n + 1) * HW], axis=1, keepdims=True)
         for n in range(NTOT)],
        axis=1) * jnp.float32(1.0 / HW)                       # (COUT, NTOT)

    f_t = f_ref[...]                                          # (FEAT, NTOT)

    # Merged reg+cls FC heads, transposed.  z = [f | y]; instead of a lane
    # concat, split w1^T by lanes:
    #   w1^T @ z^T == w1^T[:, :FEAT] @ f^T + w1^T[:, FEAT:] @ y^T.
    w1f_t = ps_ref[R_W1:R_W1 + NHEAD, 0:FEAT]                 # (64, 8)
    w1y_t = ps_ref[R_W1:R_W1 + NHEAD, FEAT:ZDIM]              # (64, 8)
    b1_t = ps_ref[R_W1:R_W1 + NHEAD, ZDIM:ZDIM + 1]           # (64, 1)
    h_t = jnp.maximum(
        jnp.dot(w1f_t, f_t, preferred_element_type=jnp.float32)
        + jnp.dot(w1y_t, y_t, preferred_element_type=jnp.float32)
        + b1_t, 0.0)                                          # (64, NTOT)

    # Block-diagonal output matmul: row 0 = fc_reg, row 1 = fc_class.
    w2_t = ps_ref[R_W2:R_W2 + 2, 0:NHEAD]                     # (2, 64)
    b2_t = ps_ref[R_W2:R_W2 + 2, NHEAD:NHEAD + 1]             # (2, 1)
    o_ref[...] = (jnp.dot(w2_t, h_t, preferred_element_type=jnp.float32)
                  + b2_t)                                     # (2, NTOT)


# ------------------------------ parameters ---------------------------------
def init_params(key):
    ks = jax.random.split(key, 10)
    p = {
        "conv_w": 0.1 * jax.random.normal(ks[0], (KH * KW, CIN, COUT), jnp.float32),
        "conv_b": 0.1 * jax.random.normal(ks[1], (1, COUT), jnp.float32),
        "fc_reg": (
            0.1 * jax.random.normal(ks[2], (ZDIM, HID), jnp.float32),
            0.1 * jax.random.normal(ks[3], (1, HID), jnp.float32),
            0.1 * jax.random.normal(ks[4], (HID, 1), jnp.float32),
            0.1 * jax.random.normal(ks[5], (1, 1), jnp.float32),
        ),
        "fc_class": (
            0.1 * jax.random.normal(ks[6], (ZDIM, HID), jnp.float32),
            0.1 * jax.random.normal(ks[7], (1, HID), jnp.float32),
            0.1 * jax.random.normal(ks[8], (HID, 1), jnp.float32),
            0.1 * jax.random.normal(ks[9], (1, 1), jnp.float32),
        ),
        # TODO(synk): self.lmd is a learnable scalar unused in forward();
        # kept for parity but never read.
        "lmd": jnp.ones((1,), jnp.float32),
    }
    return p


def pack_params(params):
    """Pack all small parameters into one (80, 128) f32 slab (built ONCE)."""
    slab = jnp.zeros((PSLAB_ROWS, PSLAB_LANES), jnp.float32)
    # conv block: transposed weights + bias column.
    cw_t = params["conv_w"].reshape(KTAP, COUT).T             # (8, 36)
    cb_t = params["conv_b"].T                                  # (8, 1)
    slab = slab.at[R_CONV:R_CONV + COUT, 0:KTAP].set(cw_t)
    slab = slab.at[R_CONV:R_CONV + COUT, KTAP:KTAP + 1].set(cb_t)
    # merged FC hidden layer (reg rows 0..31, class rows 32..63), transposed.
    w1r, b1r, w2r, b2r = params["fc_reg"]
    w1c, b1c, w2c, b2c = params["fc_class"]
    w1_t = jnp.concatenate([w1r, w1c], axis=1).T               # (64, 16)
    b1_t = jnp.concatenate([b1r, b1c], axis=1).T               # (64, 1)
    slab = slab.at[R_W1:R_W1 + NHEAD, 0:ZDIM].set(w1_t)
    slab = slab.at[R_W1:R_W1 + NHEAD, ZDIM:ZDIM + 1].set(b1_t)
    # block-diagonal output layer, transposed.
    w2_t = jnp.zeros((2, NHEAD), jnp.float32)
    w2_t = w2_t.at[0, 0:HID].set(w2r[:, 0])
    w2_t = w2_t.at[1, HID:NHEAD].set(w2c[:, 0])
    b2_t = jnp.concatenate([b2r, b2c], axis=0)                 # (2, 1)
    slab = slab.at[R_W2:R_W2 + 2, 0:NHEAD].set(w2_t)
    slab = slab.at[R_W2:R_W2 + 2, NHEAD:NHEAD + 1].set(b2_t)
    return slab


# ------------------------------ CNFNet forward ------------------------------
@jax.jit
def cnfnet_forward(pslab, un_inc, c_inc, un_f, c_f):
    # Wrapper glue (pure data movement): batch-fuse un/c, pad spatially by 1,
    # and build the 9 pre-shifted conv taps directly in the transposed
    # (lane-dense) layout: rows = (tap, cin), lanes = (sample, h, w).
    # (Tap formation could move in-kernel if a trace showed this fusion
    # dominating; left in the wrapper per review "optional" guidance.)
    x = jnp.concatenate([un_inc, c_inc], axis=0)              # (NTOT, CIN, H, W)
    xp = jnp.pad(x, ((0, 0), (0, 0), (1, 1), (1, 1)))         # padding = 1
    taps_t = jnp.concatenate(
        [jnp.transpose(xp[:, :, kh:kh + H, kw:kw + W], (1, 0, 2, 3))
             .reshape(CIN, NTOT * HW)
         for kh in range(KH) for kw in range(KW)],
        axis=0)                                               # (KTAP, NTOT*HW)
    f_t = jnp.concatenate([un_f, c_f], axis=0).T              # (FEAT, NTOT)

    vmem = pl.BlockSpec(memory_space=pltpu.MemorySpace.VMEM)
    out_t = pl.pallas_call(
        _cnfnet_kernel,
        out_shape=jax.ShapeDtypeStruct((2, NTOT), jnp.float32),
        in_specs=[vmem, vmem, vmem],
        out_specs=vmem,
    )(taps_t, pslab, f_t)

    # Row 0 = fc_reg, row 1 = fc_class; columns 0..B-1 are the "un" samples,
    # columns B..2B-1 the "c" samples.
    z_reg_un = out_t[0, :B].reshape(B, 1)
    z_reg_c = out_t[0, B:].reshape(B, 1)
    z_cls_un = out_t[1, :B].reshape(B, 1)
    z_cls_c = out_t[1, B:].reshape(B, 1)
    return z_reg_un, z_reg_c, z_cls_un, z_cls_c


# ------------------------ pure-JAX reference (check) ------------------------
def _energy_ref(x_nchw, conv_w, conv_b):
    x = jnp.transpose(x_nchw, (0, 2, 3, 1))
    w = conv_w.reshape(KH, KW, CIN, COUT)
    y = lax.conv_general_dilated(
        x, w, window_strides=(1, 1), padding="SAME",
        dimension_numbers=("NHWC", "HWIO", "NHWC"))
    y = jnp.maximum(y + conv_b[0], 0.0)
    return jnp.mean(y, axis=(1, 2))


def _fc_ref(z, fc_params):
    w1, b1, w2, b2 = fc_params
    h = jnp.maximum(z @ w1 + b1, 0.0)
    return h @ w2 + b2


def cnfnet_ref(params, un_inc, c_inc, un_f, c_f):
    un_y = _energy_ref(un_inc, params["conv_w"], params["conv_b"])
    c_y = _energy_ref(c_inc, params["conv_w"], params["conv_b"])
    un_z = jnp.concatenate([un_f, un_y], axis=1)
    c_z = jnp.concatenate([c_f, c_y], axis=1)
    return (_fc_ref(un_z, params["fc_reg"]), _fc_ref(c_z, params["fc_reg"]),
            _fc_ref(un_z, params["fc_class"]), _fc_ref(c_z, params["fc_class"]))


if __name__ == "__main__":
    key = jax.random.PRNGKey(0)
    k_p, k1, k2, k3, k4 = jax.random.split(key, 5)
    params = init_params(k_p)
    pslab = pack_params(params)          # built once, outside the forward jit

    un_inc = jax.random.normal(k1, (B, CIN, H, W), jnp.float32)   # NCHW
    c_inc = jax.random.normal(k2, (B, CIN, H, W), jnp.float32)    # NCHW
    un_f = jax.random.normal(k3, (B, FEAT), jnp.float32)
    c_f = jax.random.normal(k4, (B, FEAT), jnp.float32)

    out = cnfnet_forward(pslab, un_inc, c_inc, un_f, c_f)
    out = jax.block_until_ready(out)

    ref = cnfnet_ref(params, un_inc, c_inc, un_f, c_f)
    for o, r in zip(out, ref):
        assert o.shape == (B, 1), o.shape
        assert jnp.allclose(o, r, rtol=1e-3, atol=1e-3), (o, r)

    # TODO(synk): get_class()'s round(sigmoid(.)), get_reg(), and combo_loss()
    # (training-time utilities) are not part of forward() and are left out.
    print("KERNEL_OK")
</pallas_src>

<mosaic_0001>
module attributes {stable_mosaic.version = 11 : i64} {
  func.func @_cnfnet_kernel(%arg0: memref<36x1024xf32, #tpu.memory_space<vmem>>, %arg1: memref<80x128xf32, #tpu.memory_space<vmem>>, %arg2: memref<8x4xf32, #tpu.memory_space<vmem>>, %arg3: memref<2x4xf32, #tpu.memory_space<vmem>>) attributes {dimension_semantics = [], scalar_prefetch = 0 : i64, scratch_operands = 0 : i64, tpu.core_type = #tpu.core_type<tc>} {
    %c0 = arith.constant 0 : index
    %c0_0 = arith.constant 0 : index
    %0 = vector.load %arg1[%c0, %c0_0] : memref<80x128xf32, #tpu.memory_space<vmem>>, vector<8x36xf32>
    %c0_1 = arith.constant 0 : index
    %c36 = arith.constant 36 : index
    %1 = vector.load %arg1[%c0_1, %c36] : memref<80x128xf32, #tpu.memory_space<vmem>>, vector<8x1xf32>
    %c0_2 = arith.constant 0 : index
    %c0_3 = arith.constant 0 : index
    %2 = vector.load %arg0[%c0_2, %c0_3] : memref<36x1024xf32, #tpu.memory_space<vmem>>, vector<36x1024xf32>
    %cst = arith.constant dense<0.000000e+00> : vector<8x1024xf32>
    %3 = tpu.matmul %0, %2, %cst {dimension_numbers = #tpu.dot_dimension_numbers<[1], [0], [0], [1], [0, 0, 1, 1], [], []>} : vector<8x36xf32>, vector<36x1024xf32>, vector<8x1024xf32> -> vector<8x1024xf32>
    %4 = vector.broadcast %1 : vector<8x1xf32> to vector<8x1024xf32>
    %5 = arith.addf %3, %4 : vector<8x1024xf32>
    %cst_4 = arith.constant 0.000000e+00 : f32
    %6 = vector.broadcast %cst_4 : f32 to vector<8x1024xf32>
    %7 = arith.maximumf %5, %6 : vector<8x1024xf32>
    %8 = vector.extract_strided_slice %7 {offsets = [0, 0], sizes = [8, 256], strides = [1, 1]} : vector<8x1024xf32> to vector<8x256xf32>
    %cst_5 = arith.constant dense<0.000000e+00> : vector<8xf32>
    %9 = vector.multi_reduction <add>, %8, %cst_5 [1] : vector<8x256xf32> to vector<8xf32>
    %10 = vector.shape_cast %9 : vector<8xf32> to vector<8x1xf32>
    %11 = vector.extract_strided_slice %7 {offsets = [0, 256], sizes = [8, 256], strides = [1, 1]} : vector<8x1024xf32> to vector<8x256xf32>
    %cst_6 = arith.constant dense<0.000000e+00> : vector<8xf32>
    %12 = vector.multi_reduction <add>, %11, %cst_6 [1] : vector<8x256xf32> to vector<8xf32>
    %13 = vector.shape_cast %12 : vector<8xf32> to vector<8x1xf32>
    %14 = vector.extract_strided_slice %7 {offsets = [0, 512], sizes = [8, 256], strides = [1, 1]} : vector<8x1024xf32> to vector<8x256xf32>
    %cst_7 = arith.constant dense<0.000000e+00> : vector<8xf32>
    %15 = vector.multi_reduction <add>, %14, %cst_7 [1] : vector<8x256xf32> to vector<8xf32>
    %16 = vector.shape_cast %15 : vector<8xf32> to vector<8x1xf32>
    %17 = vector.extract_strided_slice %7 {offsets = [0, 768], sizes = [8, 256], strides = [1, 1]} : vector<8x1024xf32> to vector<8x256xf32>
    %cst_8 = arith.constant dense<0.000000e+00> : vector<8xf32>
    %18 = vector.multi_reduction <add>, %17, %cst_8 [1] : vector<8x256xf32> to vector<8xf32>
    %19 = vector.shape_cast %18 : vector<8xf32> to vector<8x1xf32>
    %20 = tpu.concatenate %10, %13, %16, %19 in 1 : vector<8x1xf32>, vector<8x1xf32>, vector<8x1xf32>, vector<8x1xf32> -> vector<8x4xf32>
    %cst_9 = arith.constant 3.906250e-03 : f32
    %21 = vector.broadcast %cst_9 : f32 to vector<8x4xf32>
    %22 = arith.mulf %20, %21 : vector<8x4xf32>
    %c0_10 = arith.constant 0 : index
    %c0_11 = arith.constant 0 : index
    %23 = vector.load %arg2[%c0_10, %c0_11] : memref<8x4xf32, #tpu.memory_space<vmem>>, vector<8x4xf32>
    %c8 = arith.constant 8 : index
    %c0_12 = arith.constant 0 : index
    %24 = vector.load %arg1[%c8, %c0_12] : memref<80x128xf32, #tpu.memory_space<vmem>>, vector<64x8xf32>
    %c8_13 = arith.constant 8 : index
    %c8_14 = arith.constant 8 : index
    %25 = vector.load %arg1[%c8_13, %c8_14] : memref<80x128xf32, #tpu.memory_space<vmem>>, vector<64x8xf32>
    %c8_15 = arith.constant 8 : index
    %c16 = arith.constant 16 : index
    %26 = vector.load %arg1[%c8_15, %c16] : memref<80x128xf32, #tpu.memory_space<vmem>>, vector<64x1xf32>
    %cst_16 = arith.constant dense<0.000000e+00> : vector<64x4xf32>
    %27 = tpu.matmul %24, %23, %cst_16 {dimension_numbers = #tpu.dot_dimension_numbers<[1], [0], [0], [1], [0, 0, 1, 1], [], []>} : vector<64x8xf32>, vector<8x4xf32>, vector<64x4xf32> -> vector<64x4xf32>
    %cst_17 = arith.constant dense<0.000000e+00> : vector<64x4xf32>
    %28 = tpu.matmul %25, %22, %cst_17 {dimension_numbers = #tpu.dot_dimension_numbers<[1], [0], [0], [1], [0, 0, 1, 1], [], []>} : vector<64x8xf32>, vector<8x4xf32>, vector<64x4xf32> -> vector<64x4xf32>
    %29 = arith.addf %27, %28 : vector<64x4xf32>
    %30 = vector.broadcast %26 : vector<64x1xf32> to vector<64x4xf32>
    %31 = arith.addf %29, %30 : vector<64x4xf32>
    %cst_18 = arith.constant 0.000000e+00 : f32
    %32 = vector.broadcast %cst_18 : f32 to vector<64x4xf32>
    %33 = arith.maximumf %31, %32 : vector<64x4xf32>
    %c72 = arith.constant 72 : index
    %c0_19 = arith.constant 0 : index
    %34 = vector.load %arg1[%c72, %c0_19] : memref<80x128xf32, #tpu.memory_space<vmem>>, vector<2x64xf32>
    %c72_20 = arith.constant 72 : index
    %c64 = arith.constant 64 : index
    %35 = vector.load %arg1[%c72_20, %c64] : memref<80x128xf32, #tpu.memory_space<vmem>>, vector<2x1xf32>
    %cst_21 = arith.constant dense<0.000000e+00> : vector<2x4xf32>
    %36 = tpu.matmul %34, %33, %cst_21 {dimension_numbers = #tpu.dot_dimension_numbers<[1], [0], [0], [1], [0, 0, 1, 1], [], []>} : vector<2x64xf32>, vector<64x4xf32>, vector<2x4xf32> -> vector<2x4xf32>
    %37 = vector.broadcast %35 : vector<2x1xf32> to vector<2x4xf32>
    %38 = arith.addf %36, %37 : vector<2x4xf32>
    %c0_22 = arith.constant 0 : index
    %c0_23 = arith.constant 0 : index
    %39 = vector.load %arg3[%c0_22, %c0_23] : memref<2x4xf32, #tpu.memory_space<vmem>>, vector<2x4xf32>
    tpu.vector_store %arg3[%c0_22, %c0_23], %38 {strides = array<i32>} : memref<2x4xf32, #tpu.memory_space<vmem>>, vector<2x4xf32>,
    return
  }
}

</mosaic_0001>

<llo_original>
// kernel: cnfnet_forward.1
$region0: #{cnfnet_forward.1}
  #allocation0 [shape = 'u32[]', space=smem, size = 0x4, offset = 0x4, fixed_abs, tag = 'smem constant byte address 0x4 - core index']
  #allocation1 [shape = 'u32[72,128]{1,0:T(1,128)}', space=vmem, size = 0x9000, scoped, tag = 'internal scratch']
  %s0 = inlined_call_operand.vmem [shape: f32[36,1024], index: 0, kind: input, shape index: {}]
  %s1 = inlined_call_operand.vmem [shape: f32[80,128], index: 1, kind: input, shape index: {}]
  %s2 = inlined_call_operand.vmem [shape: f32[8,4], index: 2, kind: input, shape index: {}]
  %s3 = inlined_call_operand.vmem [shape: f32[2,4], index: 3, kind: output, shape index: {}]
  %s4 = sld [smem:[#allocation0]]
  $region22: #{cnfnet_forward.1} parent=0
    _
  %s6 = ssub.s32 1, %s4
  %s7 = scalar_select 0, %s6, %s4
  // Predicated region
  $region2: #{cnfnet_forward.1} parent=0 // pred_check
    _
  $region3: #{cnfnet_forward.1} parent=0 // pred_check_branch
    %9 = sbr.rel (0) target = $region5
  $region4: #{cnfnet_forward.1} parent=0 // pred_region
    _
  $region5: #{cnfnet_forward.1} parent=0 // pred_fallthru
    _
  // Predicated region
  $region6: #{cnfnet_forward.1} parent=0 // pred_check
    _
  $region7: #{cnfnet_forward.1} parent=0 // pred_check_branch
    %11 = sbr.rel (0) target = $region9
  $region8: #{cnfnet_forward.1} parent=0 // pred_region
    _
  $region9: #{cnfnet_forward.1} parent=0 // pred_fallthru
    _
  // Predicated region
  $region10: #{cnfnet_forward.1} parent=0 // pred_check
    _
  $region11: #{cnfnet_forward.1} parent=0 // pred_check_branch
    %13 = sbr.rel (0) target = $region13
  $region12: #{cnfnet_forward.1} parent=0 // pred_region
    _
  $region13: #{cnfnet_forward.1} parent=0 // pred_fallthru
    _
  %v14 = vld [vmem:[%s1] sm:$0xff]
  %v15 = vld [vmem:[%s0] sm:$0xff]
  %v16 = vld [vmem:[%s0 + $0x8] sm:$0xff]
  %v17 = vld [vmem:[%s0 + $0x10] sm:$0xff]
  %v18 = vld [vmem:[%s0 + $0x18] sm:$0xff]
  %v19 = vld [vmem:[%s0 + $0x20] sm:$0xff]
  %v20 = vld [vmem:[%s0 + $0x28] sm:$0xff]
  %v21 = vld [vmem:[%s0 + $0x30] sm:$0xff]
  %v22 = vld [vmem:[%s0 + $0x38] sm:$0xff]
  %v23 = vld [vmem:[%s0 + $0x40] sm:$0xff]
  %v24 = vld [vmem:[%s0 + $0x48] sm:$0xff]
  %v25 = vld [vmem:[%s0 + $0x50] sm:$0xff]
  %v26 = vld [vmem:[%s0 + $0x58] sm:$0xff]
  %v27 = vld [vmem:[%s0 + $0x60] sm:$0xff]
  %v28 = vld [vmem:[%s0 + $0x68] sm:$0xff]
  %v29 = vld [vmem:[%s0 + $0x70] sm:$0xff]
  %v30 = vld [vmem:[%s0 + $0x78] sm:$0xff]
  %v31 = vld [vmem:[%s0 + $0x80] sm:$0xff]
  %v32 = vld [vmem:[%s0 + $0x88] sm:$0xff]
  %v33 = vld [vmem:[%s0 + $0x90] sm:$0xff]
  %v34 = vld [vmem:[%s0 + $0x98] sm:$0xff]
  %v35 = vld [vmem:[%s0 + $0xa0] sm:$0xff]
  %v36 = vld [vmem:[%s0 + $0xa8] sm:$0xff]
  %v37 = vld [vmem:[%s0 + $0xb0] sm:$0xff]
  %v38 = vld [vmem:[%s0 + $0xb8] sm:$0xff]
  %v39 = vld [vmem:[%s0 + $0xc0] sm:$0xff]
  %v40 = vld [vmem:[%s0 + $0xc8] sm:$0xff]
  %v41 = vld [vmem:[%s0 + $0xd0] sm:$0xff]
  %v42 = vld [vmem:[%s0 + $0xd8] sm:$0xff]
  %v43 = vld [vmem:[%s0 + $0xe0] sm:$0xff]
  %v44 = vld [vmem:[%s0 + $0xe8] sm:$0xff]
  %v45 = vld [vmem:[%s0 + $0xf0] sm:$0xff]
  %v46 = vld [vmem:[%s0 + $0xf8] sm:$0xff]
  %v47 = vld [vmem:[%s0 + $0x100] sm:$0xf]
  %v48 = vld [vmem:[%s0 + $0x108] sm:$0xf]
  %v49 = vld [vmem:[%s0 + $0x110] sm:$0xf]
  %v50 = vld [vmem:[%s0 + $0x118] sm:$0xf]
  %v51 = vld [vmem:[%s0 + $0x120] sm:$0xf]
  %v52 = vld [vmem:[%s0 + $0x128] sm:$0xf]
  %v53 = vld [vmem:[%s0 + $0x130] sm:$0xf]
  %v54 = vld [vmem:[%s0 + $0x138] sm:$0xf]
  %56 = vset.pattern.permute.xlu0 36
  %57 = vperm.xlu0 %56, %v14
  %v58 = vpop.permute.xlu0 %57
  %vm60 = vcmask 293888
  %v61 = vsel %vm60, %v14, 0
  %vm63 = vcmask 1043456
  %v65 = vsel %vm63, %v47, 0
  %v68 = vsel %vm63, %v48, 0
  %v71 = vsel %vm63, %v49, 0
  %v74 = vsel %vm63, %v50, 0
  %v77 = vsel %vm63, %v51, 0
  %v80 = vsel %vm63, %v52, 0
  %v83 = vsel %vm63, %v53, 0
  %v86 = vsel %vm63, %v54, 0
  %88 = vmatpush.msra.mxu0 0.0
  %89 = vmatpush.msra.mxu0 0.0
  %90 = vmatpush.msra.mxu0 0.0
  %91 = vmatpush.msra.mxu0 0.0
  %92 = vmatpush.msra.mxu0 0.0
  %93 = vmatpush.msra.mxu0 0.0
  %94 = vmatpush.msra.mxu0 0.0
  %95 = vmatpush.msra.mxu0 0.0
  %96 = vmatpush.msra.mxu0 0.0
  %97 = vmatpush.msra.mxu0 0.0
  %98 = vmatpush.msra.mxu0 0.0
  %99 = vmatpush.msra.mxu0 %v65
  %100 = vmatpush.msra.mxu0 %v39
  %101 = vmatpush.msra.mxu0 %v31
  %102 = vmatpush.msra.mxu0 %v23
  %103 = vmatpush.msra.mxu0 %v15
  %104 = vmatmul.f32.gmra.mxu0 %v61
  %v105 = vpop.f32.mrf.mxu0
  %v106 = vadd.f32 %v58, %v105
  %107 = vdwg.mxu0
  %108 = vmatpush.msra.mxu0 0.0
  %109 = vmatpush.msra.mxu0 0.0
  %110 = vmatpush.msra.mxu0 0.0
  %111 = vmatpush.msra.mxu0 0.0
  %112 = vmatpush.msra.mxu0 0.0
  %113 = vmatpush.msra.mxu0 0.0
  %114 = vmatpush.msra.mxu0 0.0
  %115 = vmatpush.msra.mxu0 0.0
  %116 = vmatpush.msra.mxu0 0.0
  %117 = vmatpush.msra.mxu0 0.0
  %118 = vmatpush.msra.mxu0 0.0
  %119 = vmatpush.msra.mxu0 %v68
  %120 = vmatpush.msra.mxu0 %v40
  %121 = vmatpush.msra.mxu0 %v32
  %122 = vmatpush.msra.mxu0 %v24
  %123 = vmatpush.msra.mxu0 %v16
  %124 = vmatmul.f32.gmra.mxu0 %v61
  %v125 = vpop.f32.mrf.mxu0
  %v126 = vadd.f32 %v58, %v125
  %127 = vdwg.mxu0
  %128 = vmatpush.msra.mxu0 0.0
  %129 = vmatpush.msra.mxu0 0.0
  %130 = vmatpush.msra.mxu0 0.0
  %131 = vmatpush.msra.mxu0 0.0
  %132 = vmatpush.msra.mxu0 0.0
  %133 = vmatpush.msra.mxu0 0.0
  %134 = vmatpush.msra.mxu0 0.0
  %135 = vmatpush.msra.mxu0 0.0
  %136 = vmatpush.msra.mxu0 0.0
  %137 = vmatpush.msra.mxu0 0.0
  %138 = vmatpush.msra.mxu0 0.0
  %139 = vmatpush.msra.mxu0 %v71
  %140 = vmatpush.msra.mxu0 %v41
  %141 = vmatpush.msra.mxu0 %v33
  %142 = vmatpush.msra.mxu0 %v25
  %143 = vmatpush.msra.mxu0 %v17
  %144 = vmatmul.f32.gmra.mxu0 %v61
  %v145 = vpop.f32.mrf.mxu0
  %v146 = vadd.f32 %v58, %v145
  %147 = vdwg.mxu0
  %148 = vmatpush.msra.mxu0 0.0
  %149 = vmatpush.msra.mxu0 0.0
  %150 = vmatpush.msra.mxu0 0.0
  %151 = vmatpush.msra.mxu0 0.0
  %152 = vmatpush.msra.mxu0 0.0
  %153 = vmatpush.msra.mxu0 0.0
  %154 = vmatpush.msra.mxu0 0.0
  %155 = vmatpush.msra.mxu0 0.0
  %156 = vmatpush.msra.mxu0 0.0
  %157 = vmatpush.msra.mxu0 0.0
  %158 = vmatpush.msra.mxu0 0.0
  %159 = vmatpush.msra.mxu0 %v74
  %160 = vmatpush.msra.mxu0 %v42
  %161 = vmatpush.msra.mxu0 %v34
  %162 = vmatpush.msra.mxu0 %v26
  %163 = vmatpush.msra.mxu0 %v18
  %164 = vmatmul.f32.gmra.mxu0 %v61
  %v165 = vpop.f32.mrf.mxu0
  %v166 = vadd.f32 %v58, %v165
  %167 = vdwg.mxu0
  %168 = vmatpush.msra.mxu0 0.0
  %169 = vmatpush.msra.mxu0 0.0
  %170 = vmatpush.msra.mxu0 0.0
  %171 = vmatpush.msra.mxu0 0.0
  %172 = vmatpush.msra.mxu0 0.0
  %173 = vmatpush.msra.mxu0 0.0
  %174 = vmatpush.msra.mxu0 0.0
  %175 = vmatpush.msra.mxu0 0.0
  %176 = vmatpush.msra.mxu0 0.0
  %177 = vmatpush.msra.mxu0 0.0
  %178 = vmatpush.msra.mxu0 0.0
  %179 = vmatpush.msra.mxu0 %v77
  %180 = vmatpush.msra.mxu0 %v43
  %181 = vmatpush.msra.mxu0 %v35
  %182 = vmatpush.msra.mxu0 %v27
  %183 = vmatpush.msra.mxu0 %v19
  %184 = vmatmul.f32.gmra.mxu0 %v61
  %v185 = vpop.f32.mrf.mxu0
  %v186 = vadd.f32 %v58, %v185
  %187 = vdwg.mxu0
  %188 = vmatpush.msra.mxu0 0.0
  %189 = vmatpush.msra.mxu0 0.0
  %190 = vmatpush.msra.mxu0 0.0
  %191 = vmatpush.msra.mxu0 0.0
  %192 = vmatpush.msra.mxu0 0.0
  %193 = vmatpush.msra.mxu0 0.0
  %194 = vmatpush.msra.mxu0 0.0
  %195 = vmatpush.msra.mxu0 0.0
  %196 = vmatpush.msra.mxu0 0.0
  %197 = vmatpush.msra.mxu0 0.0
  %198 = vmatpush.msra.mxu0 0.0
  %199 = vmatpush.msra.mxu0 %v80
  %200 = vmatpush.msra.mxu0 %v44
  %201 = vmatpush.msra.mxu0 %v36
  %202 = vmatpush.msra.mxu0 %v28
  %203 = vmatpush.msra.mxu0 %v20
  %204 = vmatmul.f32.gmra.mxu0 %v61
  %v205 = vpop.f32.mrf.mxu0
  %v206 = vadd.f32 %v58, %v205
  %207 = vdwg.mxu0
  %208 = vmatpush.msra.mxu0 0.0
  %209 = vmatpush.msra.mxu0 0.0
  %210 = vmatpush.msra.mxu0 0.0
  %211 = vmatpush.msra.mxu0 0.0
  %212 = vmatpush.msra.mxu0 0.0
  %213 = vmatpush.msra.mxu0 0.0
  %214 = vmatpush.msra.mxu0 0.0
  %215 = vmatpush.msra.mxu0 0.0
  %216 = vmatpush.msra.mxu0 0.0
  %217 = vmatpush.msra.mxu0 0.0
  %218 = vmatpush.msra.mxu0 0.0
  %219 = vmatpush.msra.mxu0 %v83
  %220 = vmatpush.msra.mxu0 %v45
  %221 = vmatpush.msra.mxu0 %v37
  %222 = vmatpush.msra.mxu0 %v29
  %223 = vmatpush.msra.mxu0 %v21
  %224 = vmatmul.f32.gmra.mxu0 %v61
  %v225 = vpop.f32.mrf.mxu0
  %v226 = vadd.f32 %v58, %v225
  %227 = vdwg.mxu0
  %228 = vmatpush.msra.mxu0 0.0
  %229 = vmatpush.msra.mxu0 0.0
  %230 = vmatpush.msra.mxu0 0.0
  %231 = vmatpush.msra.mxu0 0.0
  %232 = vmatpush.msra.mxu0 0.0
  %233 = vmatpush.msra.mxu0 0.0
  %234 = vmatpush.msra.mxu0 0.0
  %235 = vmatpush.msra.mxu0 0.0
  %236 = vmatpush.msra.mxu0 0.0
  %237 = vmatpush.msra.mxu0 0.0
  %238 = vmatpush.msra.mxu0 0.0
  %239 = vmatpush.msra.mxu0 %v86
  %240 = vmatpush.msra.mxu0 %v46
  %241 = vmatpush.msra.mxu0 %v38
  %242 = vmatpush.msra.mxu0 %v30
  %243 = vmatpush.msra.mxu0 %v22
  %244 = vmatmul.f32.gmra.mxu0 %v61
  %v245 = vpop.f32.mrf.mxu0
  %v246 = vadd.f32 %v58, %v245
  %247 = vdwg.mxu0
  %v248 = vmax.f32 %v106, 0.0
  %v249 = vmax.f32 %v126, 0.0
  %v250 = vmax.f32 %v146, 0.0
  %v251 = vmax.f32 %v166, 0.0
  %v252 = vmax.f32 %v186, 0.0
  %v253 = vmax.f32 %v206, 0.0
  %v254 = vmax.f32 %v226, 0.0
  %v255 = vmax.f32 %v246, 0.0
  %v256 = vadd.f32 %v248, %v249
  %257 = vadd.xlane.f32.xlu0 %v256
  %v258 = vpop.xlane.xlu0 %257
  %v259 = vadd.f32 %v250, %v251
  %260 = vadd.xlane.f32.xlu0 %v259
  %v261 = vpop.xlane.xlu0 %260
  %v262 = vadd.f32 %v252, %v253
  %263 = vadd.xlane.f32.xlu0 %v262
  %v264 = vpop.xlane.xlu0 %263
  %v265 = vadd.f32 %v254, %v255
  %266 = vadd.xlane.f32.xlu0 %v265
  %v267 = vpop.xlane.xlu0 %266
  %vm268 = vcmask 7168
  %v269 = vsel %vm268, %v258, %v261
  %vm270 = vcmask 15360
  %v271 = vsel %vm270, %v269, %v264
  %vm272 = vcmask 23552
  %v273 = vsel %vm272, %v271, %v267
  %v274 = vmul.f32 %v273, 0.00390625
  %v275 = vld [vmem:[%s2] sm:$0xff]
  %v276 = vld [vmem:[%s1 + $0x8] sm:$0xff]
  %v277 = vld [vmem:[%s1 + $0x10] sm:$0xff]
  %v278 = vld [vmem:[%s1 + $0x18] sm:$0xff]
  %v279 = vld [vmem:[%s1 + $0x20] sm:$0xff]
  %v280 = vld [vmem:[%s1 + $0x28] sm:$0xff]
  %v281 = vld [vmem:[%s1 + $0x30] sm:$0xff]
  %v282 = vld [vmem:[%s1 + $0x38] sm:$0xff]
  %v283 = vld [vmem:[%s1 + $0x40] sm:$0xff]
  %292 = vrot.lane.b32.xlu0 %v276, 120
  %v293 = vpop.permute.xlu0 %292
  %294 = vrot.lane.b32.xlu0 %v277, 120
  %v295 = vpop.permute.xlu0 %294
  %296 = vrot.lane.b32.xlu0 %v278, 120
  %v297 = vpop.permute.xlu0 %296
  %298 = vrot.lane.b32.xlu0 %v279, 120
  %v299 = vpop.permute.xlu0 %298
  %300 = vrot.lane.b32.xlu0 %v280, 120
  %v301 = vpop.permute.xlu0 %300
  %302 = vrot.lane.b32.xlu0 %v281, 120
  %v303 = vpop.permute.xlu0 %302
  %304 = vrot.lane.b32.xlu0 %v282, 120
  %v305 = vpop.permute.xlu0 %304
  %306 = vrot.lane.b32.xlu0 %v283, 120
  %v307 = vpop.permute.xlu0 %306
  %vm308 = vcmask 64512
  %v309 = vsel %vm308, %v293, 0
  %v311 = vsel %vm308, %v295, 0
  %v313 = vsel %vm308, %v297, 0
  %v315 = vsel %vm308, %v299, 0
  %v317 = vsel %vm308, %v301, 0
  %v319 = vsel %vm308, %v303, 0
  %v321 = vsel %vm308, %v305, 0
  %v323 = vsel %vm308, %v307, 0
  %325 = vmatpush.msra.mxu0 0.0
  %326 = vmatpush.msra.mxu0 0.0
  %327 = vmatpush.msra.mxu0 0.0
  %328 = vmatpush.msra.mxu0 0.0
  %329 = vmatpush.msra.mxu0 0.0
  %330 = vmatpush.msra.mxu0 0.0
  %331 = vmatpush.msra.mxu0 0.0
  %332 = vmatpush.msra.mxu0 0.0
  %333 = vmatpush.msra.mxu0 0.0
  %334 = vmatpush.msra.mxu0 0.0
  %335 = vmatpush.msra.mxu0 0.0
  %336 = vmatpush.msra.mxu0 0.0
  %337 = vmatpush.msra.mxu0 0.0
  %338 = vmatpush.msra.mxu0 0.0
  %339 = vmatpush.msra.mxu0 0.0
  %340 = vmatpush.msra.mxu0 %v274
  %341 = vmatmul.f32.gmra.mxu0 %v309
  %v342 = vpop.f32.mrf.mxu0
  %v343 = vadd.f32 0.0, %v342
  %344 = vmatmul.f32.gmra.mxu0 %v311
  %v345 = vpop.f32.mrf.mxu0
  %v346 = vadd.f32 0.0, %v345
  %347 = vmatmul.f32.gmra.mxu0 %v313
  %v348 = vpop.f32.mrf.mxu0
  %v349 = vadd.f32 0.0, %v348
  %350 = vmatmul.f32.gmra.mxu0 %v315
  %v351 = vpop.f32.mrf.mxu0
  %v352 = vadd.f32 0.0, %v351
  %353 = vmatmul.f32.gmra.mxu0 %v317
  %v354 = vpop.f32.mrf.mxu0
  %v355 = vadd.f32 0.0, %v354
  %356 = vmatmul.f32.gmra.mxu0 %v319
  %v357 = vpop.f32.mrf.mxu0
  %v358 = vadd.f32 0.0, %v357
  %359 = vmatmul.f32.gmra.mxu0 %v321
  %v360 = vpop.f32.mrf.mxu0
  %v361 = vadd.f32 0.0, %v360
  %362 = vmatmul.f32.gmra.mxu0 %v323
  %v363 = vpop.f32.mrf.mxu0
  %v364 = vadd.f32 0.0, %v363
  %365 = vdwg.mxu0
  %v366 = vsel %vm308, %v276, 0
  %v368 = vsel %vm308, %v277, 0
  %v370 = vsel %vm308, %v278, 0
  %v372 = vsel %vm308, %v279, 0
  %v374 = vsel %vm308, %v280, 0
  %v376 = vsel %vm308, %v281, 0
  %v378 = vsel %vm308, %v282, 0
  %v380 = vsel %vm308, %v283, 0
  %382 = vmatpush.msra.mxu0 0.0
  %383 = vmatpush.msra.mxu0 0.0
  %384 = vmatpush.msra.mxu0 0.0
  %385 = vmatpush.msra.mxu0 0.0
  %386 = vmatpush.msra.mxu0 0.0
  %387 = vmatpush.msra.mxu0 0.0
  %388 = vmatpush.msra.mxu0 0.0
  %389 = vmatpush.msra.mxu0 0.0
  %390 = vmatpush.msra.mxu0 0.0
  %391 = vmatpush.msra.mxu0 0.0
  %392 = vmatpush.msra.mxu0 0.0
  %393 = vmatpush.msra.mxu0 0.0
  %394 = vmatpush.msra.mxu0 0.0
  %395 = vmatpush.msra.mxu0 0.0
  %396 = vmatpush.msra.mxu0 0.0
  %397 = vmatpush.msra.mxu0 %v275
  %398 = vmatmul.f32.gmra.mxu0 %v366
  %v399 = vpop.f32.mrf.mxu0
  %v400 = vadd.f32 %v343, %v399
  %401 = vmatmul.f32.gmra.mxu0 %v368
  %v402 = vpop.f32.mrf.mxu0
  %v403 = vadd.f32 %v346, %v402
  %404 = vmatmul.f32.gmra.mxu0 %v370
  %v405 = vpop.f32.mrf.mxu0
  %v406 = vadd.f32 %v349, %v405
  %407 = vmatmul.f32.gmra.mxu0 %v372
  %v408 = vpop.f32.mrf.mxu0
  %v409 = vadd.f32 %v352, %v408
  %410 = vmatmul.f32.gmra.mxu0 %v374
  %v411 = vpop.f32.mrf.mxu0
  %v412 = vadd.f32 %v355, %v411
  %413 = vmatmul.f32.gmra.mxu0 %v376
  %v414 = vpop.f32.mrf.mxu0
  %v415 = vadd.f32 %v358, %v414
  %416 = vmatmul.f32.gmra.mxu0 %v378
  %v417 = vpop.f32.mrf.mxu0
  %v418 = vadd.f32 %v361, %v417
  %419 = vmatmul.f32.gmra.mxu0 %v380
  %v420 = vpop.f32.mrf.mxu0
  %v421 = vadd.f32 %v364, %v420
  %422 = vdwg.mxu0
  %423 = vset.pattern.permute.xlu0 16
  %424 = vperm.xlu0 %423, %v276
  %v425 = vpop.permute.xlu0 %424
  %427 = vset.pattern.permute.xlu0 16
  %428 = vperm.xlu0 %427, %v277
  %v429 = vpop.permute.xlu0 %428
  %431 = vset.pattern.permute.xlu0 16
  %432 = vperm.xlu0 %431, %v278
  %v433 = vpop.permute.xlu0 %432
  %435 = vset.pattern.permute.xlu0 16
  %436 = vperm.xlu0 %435, %v279
  %v437 = vpop.permute.xlu0 %436
  %439 = vset.pattern.permute.xlu0 16
  %440 = vperm.xlu0 %439, %v280
  %v441 = vpop.permute.xlu0 %440
  %443 = vset.pattern.permute.xlu0 16
  %444 = vperm.xlu0 %443, %v281
  %v445 = vpop.permute.xlu0 %444
  %447 = vset.pattern.permute.xlu0 16
  %448 = vperm.xlu0 %447, %v282
  %v449 = vpop.permute.xlu0 %448
  %451 = vset.pattern.permute.xlu0 16
  %452 = vperm.xlu0 %451, %v283
  %v453 = vpop.permute.xlu0 %452
  %v455 = vadd.f32 %v400, %v425
  %v456 = vadd.f32 %v403, %v429
  %v457 = vadd.f32 %v406, %v433
  %v458 = vadd.f32 %v409, %v437
  %v459 = vadd.f32 %v412, %v441
  %v460 = vadd.f32 %v415, %v445
  %v461 = vadd.f32 %v418, %v449
  %v462 = vadd.f32 %v421, %v453
  %v463 = vmax.f32 %v455, 0.0
  %v464 = vmax.f32 %v456, 0.0
  %v465 = vmax.f32 %v457, 0.0
  %v466 = vmax.f32 %v458, 0.0
  %v467 = vmax.f32 %v459, 0.0
  %v468 = vmax.f32 %v460, 0.0
  %v469 = vmax.f32 %v461, 0.0
  %v470 = vmax.f32 %v462, 0.0
  %v471 = vld [vmem:[%s1 + $0x48] sm:$0x3]
  %473 = vset.pattern.permute.xlu0 64
  %474 = vperm.xlu0 %473, %v471
  %v475 = vpop.permute.xlu0 %474
  %vm477 = vcmask 523264
  %v478 = vsel %vm477, %v471, 0
  %480 = vmatpush.msra.mxu0 0.0
  %481 = vmatpush.msra.mxu0 0.0
  %482 = vmatpush.msra.mxu0 0.0
  %483 = vmatpush.msra.mxu0 0.0
  %484 = vmatpush.msra.mxu0 0.0
  %485 = vmatpush.msra.mxu0 0.0
  %486 = vmatpush.msra.mxu0 0.0
  %487 = vmatpush.msra.mxu0 0.0
  %488 = vmatpush.msra.mxu0 %v470
  %489 = vmatpush.msra.mxu0 %v469
  %490 = vmatpush.msra.mxu0 %v468
  %491 = vmatpush.msra.mxu0 %v467
  %492 = vmatpush.msra.mxu0 %v466
  %493 = vmatpush.msra.mxu0 %v465
  %494 = vmatpush.msra.mxu0 %v464
  %495 = vmatpush.msra.mxu0 %v463
  %496 = vmatmul.f32.gmra.mxu0 %v478
  %v497 = vpop.f32.mrf.mxu0
  %v498 = vadd.f32 %v475, %v497
  %499 = vdwg.mxu0
  %vm500 = vcmask 25600
  %501 = vst.msk [vmem:[%s3] sm:$0x3] %vm500, %v498
  // Predicated region
  $region14: #{cnfnet_forward.1} parent=0 // pred_check
    _
  $region15: #{cnfnet_forward.1} parent=0 // pred_check_branch
    %503 = sbr.rel (0) target = $region17
  $region16: #{cnfnet_forward.1} parent=0 // pred_region
    _
  $region17: #{cnfnet_forward.1} parent=0 // pred_fallthru
    _
  // Predicated region
  $region18: #{cnfnet_forward.1} parent=0 // pred_check
    _
  $region19: #{cnfnet_forward.1} parent=0 // pred_check_branch
    %505 = sbr.rel (0) target = $region21
  $region20: #{cnfnet_forward.1} parent=0 // pred_region
    _
  $region21: #{cnfnet_forward.1} parent=0 // pred_fallthru
    _

</llo_original>
